<compile_context>
chip_gen: v6e
topology: v6e:2x2x1
jax: 0.10.0
libtpu: 0.0.40
codegen_flags: <defaults>
</compile_context>

<pallas_src>
import math

import jax
import jax.numpy as jnp
import numpy as np
from jax.experimental import pallas as pl
from jax.experimental.pallas import tpu as pltpu


# --------------------------- device helpers -------------------------------- #
def _on_tpu():
    try:
        return jax.devices()[0].platform == "tpu"
    except Exception:
        return False


def _tensorcores_per_chip():
    """Grid-shardable TensorCores per chip (2 on v7x, 1 on v5e/v6e)."""
    try:
        kind = jax.devices()[0].device_kind.lower()
    except Exception:
        return 1
    return 2 if "v7" in kind else 1


# ----------------------- padding math (bug-compatible) --------------------- #
def _same_padding_amounts(H, KH, stride=1, dilation=1):
    """Exact padding of conv2d_same_padding: rows formula; columns REUSE the
    row formula (bug-compatible with the original PyTorch code)."""
    out_rows = (H + stride - 1) // stride
    padding_rows = max(0, (out_rows - 1) * stride + (KH - 1) * dilation + 1 - H)
    rows_odd = padding_rows % 2 != 0
    pad_lo = padding_rows // 2
    pad_hi = padding_rows // 2 + int(rows_odd)
    return pad_lo, pad_hi


# ----------------------------- Pallas kernel ------------------------------- #
def _conv_folded_kernel(x_ref, m_ref, b_ref, o_ref):
    # x_ref: (Nb, Hp, WpCp)            padded, lane-dense input slab(s)
    # m_ref: (KH*WpCp, WoCp)           KH-folded banded weight matrix
    # b_ref: (1, WoCp)                 bias replicated along Wo (lane-dense), f32
    # o_ref: (Nb, Ho, WoCp)            lane-dense output slab(s)
    Nb, _, WpCp = x_ref.shape
    _, Ho, _ = o_ref.shape
    KH = m_ref.shape[0] // WpCp

    x = x_ref[...]                                        # (Nb, Hp, WpCp)
    # KH row-shifted windows concatenated along lanes (128-aligned chunk
    # boundaries), images stacked on the sublane axis: (Nb*Ho, KH*WpCp).
    xk = jnp.concatenate(
        [jnp.concatenate([x[n, kh:kh + Ho, :] for kh in range(KH)], axis=-1)
         for n in range(Nb)],
        axis=0)
    # Single MXU matmul, f32 accumulation, bias folded into the accumulator.
    acc = jnp.dot(xk, m_ref[...], preferred_element_type=jnp.float32) + b_ref[...]
    for n in range(Nb):
        o_ref[n] = acc[n * Ho:(n + 1) * Ho, :].astype(o_ref.dtype)


# ------------------------------ Wrapper ------------------------------------ #
def conv2d_same_padding_pallas(x_nchw, weight_oihw, bias,
                               stride=1, dilation=1, groups=1,
                               compute_dtype=None):
    """Reproduces conv2d_same_padding(input, weight, bias, stride, padding,
    dilation, groups) from FrangiFilterPytorch (stride/dilation/groups = 1)."""
    # TODO(synk): general stride/dilation/groups not implemented in the kernel;
    # the module is used with the defaults (stride=1, dilation=1, groups=1).
    assert stride == 1 and dilation == 1 and groups == 1

    N, Cin, H, W = x_nchw.shape
    Cout, Cin_w, KH, KW = weight_oihw.shape
    assert Cin_w == Cin

    # padding (columns reuse the row formula — bug-compatible with the spec)
    pad_top, pad_bot = _same_padding_amounts(H, KH, stride, dilation)
    pad_lft, pad_rgt = pad_top, pad_bot

    Hp = H + pad_top + pad_bot
    Wp = W + pad_lft + pad_rgt
    Ho = Hp - (KH - 1)
    Wo = Wp - (KW - 1)

    WpC = Wp * Cin
    WoC = Wo * Cout
    WpCp = -(-WpC // 128) * 128          # contraction lanes padded to x128
    WoCp = -(-WoC // 128) * 128          # output lanes padded to x128

    out_dtype = x_nchw.dtype
    if compute_dtype is None:
        # bf16 operands + f32 accumulation by default on TPU (review item).
        cdt = jnp.bfloat16 if _on_tpu() else jnp.float32
    else:
        cdt = compute_dtype

    # Banded-M scalability guard (see header note).
    assert KH * WpCp * WoCp * 4 <= 16 * 1024 * 1024, (
        "banded-Toeplitz weight too large for this formulation; "
        "switch to per-tap / im2col matmuls for this shape")

    # --- parameter transform (tiny; hoisted out of the kernel entirely) -----
    # M[kh][wp*Cin+ci, wo*Cout+co] = W[co,ci,kh,wp-wo] if 0 <= wp-wo < KW.
    w_hwio = jnp.transpose(weight_oihw, (2, 3, 1, 0))            # (KH,KW,Cin,Cout)
    kw_idx = jnp.arange(Wp)[:, None] - jnp.arange(Wo)[None, :]   # (Wp, Wo)
    valid = (kw_idx >= 0) & (kw_idx < KW)
    m5 = w_hwio[:, jnp.clip(kw_idx, 0, KW - 1)]                  # (KH,Wp,Wo,Cin,Cout)
    m5 = jnp.where(valid[None, :, :, None, None], m5, 0.0)
    m_banded = jnp.transpose(m5, (0, 1, 3, 2, 4)).reshape(KH, WpC, WoC)
    m_banded = jnp.pad(m_banded, ((0, 0), (0, WpCp - WpC), (0, WoCp - WoC)))
    m_big = m_banded.reshape(KH * WpCp, WoCp).astype(cdt)        # KH folded

    b_row = jnp.pad(jnp.tile(bias, Wo), (0, WoCp - WoC)
                    ).reshape(1, WoCp).astype(jnp.float32)

    # --- input slab: NCHW -> padded lane-dense (N, Hp, WpCp), one fused pad --
    # TODO(synk): an NHWC/lane-dense-native caller could feed this slab directly
    # and skip the transpose/reshape round trip (and the final un-transpose).
    x_slab = jnp.transpose(x_nchw, (0, 2, 3, 1)).reshape(N, H, W * Cin)
    x_slab = jnp.pad(
        x_slab,
        ((0, 0), (pad_top, pad_bot),
         (pad_lft * Cin, pad_rgt * Cin + (WpCp - WpC)))).astype(cdt)

    # --- batch / grid strategy (architecture aware) --------------------------
    tc = _tensorcores_per_chip()
    if tc > 1 and N % tc == 0:
        G = tc          # v7x: one image (group) per TensorCore, parallel axis
    else:
        G = 1           # v5e/v6e: single grid step, batch stacked on sublanes
    Nb = N // G

    out_slab = pl.pallas_call(
        _conv_folded_kernel,
        out_shape=jax.ShapeDtypeStruct((N, Ho, WoCp), out_dtype),
        grid_spec=pl.GridSpec(
            grid=(G,),
            in_specs=[
                pl.BlockSpec((Nb, Hp, WpCp), lambda g: (g, 0, 0)),
                pl.BlockSpec((KH * WpCp, WoCp), lambda g: (0, 0)),
                pl.BlockSpec((1, WoCp), lambda g: (0, 0)),
            ],
            out_specs=pl.BlockSpec((Nb, Ho, WoCp), lambda g: (g, 0, 0)),
        ),
        compiler_params=pltpu.CompilerParams(
            dimension_semantics=("parallel",)),
    )(x_slab, m_big, b_row)

    # (N, Ho, WoCp) -> drop lane padding -> NCHW (PyTorch convention)
    out = out_slab[:, :, :WoC].reshape(N, Ho, Wo, Cout)
    return jnp.transpose(out, (0, 3, 1, 2))


# --------------------------- Parameter init --------------------------------- #
def init_conv2d_params(key, in_channels, out_channels, kernel_size):
    kH, kW = kernel_size
    n = in_channels * kH * kW
    stdv = 1.0 / math.sqrt(n)
    kw_key, kb_key = jax.random.split(key)
    weight = jax.random.uniform(kw_key, (out_channels, in_channels, kH, kW),
                                jnp.float32, minval=-stdv, maxval=stdv)
    bias = jax.random.uniform(kb_key, (out_channels,),
                              jnp.float32, minval=-stdv, maxval=stdv)
    return weight, bias


# ------------------------------- Main --------------------------------------- #
if __name__ == "__main__":
    key = jax.random.PRNGKey(0)
    k_x, k_p = jax.random.split(key)

    N, Cin, H, W = 2, 4, 16, 16
    Cout, K = 8, 3

    x = jax.random.normal(k_x, (N, Cin, H, W), jnp.float32)
    weight, bias = init_conv2d_params(k_p, Cin, Cout, (K, K))

    # reference: XLA conv with the module's (bug-compatible) explicit padding
    pt, pb = _same_padding_amounts(H, K)
    pl_, pr = pt, pb  # columns reuse the row formula in the original module
    ref = jax.lax.conv_general_dilated(
        x, weight, window_strides=(1, 1),
        padding=((pt, pb), (pl_, pr)),
        dimension_numbers=("NCHW", "OIHW", "NCHW"),
    ) + bias[None, :, None, None]

    # exact f32 compute path
    out_f32 = jax.block_until_ready(
        conv2d_same_padding_pallas(x, weight, bias, compute_dtype=jnp.float32))
    assert out_f32.shape == (N, Cout, H, W), out_f32.shape
    np.testing.assert_allclose(np.asarray(out_f32), np.asarray(ref),
                               rtol=1e-5, atol=1e-5)

    # default path (bf16 operands on TPU, f32 accumulation) — looser tolerance
    out_def = jax.block_until_ready(conv2d_same_padding_pallas(x, weight, bias))
    assert out_def.shape == (N, Cout, H, W), out_def.shape
    np.testing.assert_allclose(np.asarray(out_def), np.asarray(ref),
                               rtol=5e-2, atol=5e-2)

    print("KERNEL_OK")
</pallas_src>

<mosaic_0001>
module attributes {stable_mosaic.version = 11 : i64} {
  func.func @_conv_folded_kernel(%arg0: i32, %arg1: memref<2x18x128xf32, #tpu.memory_space<vmem>>, %arg2: memref<384x128xf32, #tpu.memory_space<vmem>>, %arg3: memref<1x128xf32, #tpu.memory_space<vmem>>, %arg4: memref<2x16x128xf32, #tpu.memory_space<vmem>>) attributes {dimension_semantics = [#tpu.dimension_semantics<parallel>], iteration_bounds = array<i64: 1>, scalar_prefetch = 0 : i64, scratch_operands = 0 : i64, tpu.core_type = #tpu.core_type<tc>, window_params = [{transform_indices = @transform_0, window_bounds = array<i64: 2, 18, 128>}, {pipeline_mode = #tpu.pipeline_mode<synchronous>, transform_indices = @transform_1, window_bounds = array<i64: 384, 128>}, {pipeline_mode = #tpu.pipeline_mode<synchronous>, transform_indices = @transform_2, window_bounds = array<i64: 1, 128>}, {transform_indices = @transform_3, window_bounds = array<i64: 2, 16, 128>}]} {
    %c0 = arith.constant 0 : index
    %c0_0 = arith.constant 0 : index
    %c0_1 = arith.constant 0 : index
    %0 = vector.load %arg1[%c0, %c0_0, %c0_1] : memref<2x18x128xf32, #tpu.memory_space<vmem>>, vector<2x18x128xf32>
    %1 = vector.extract_strided_slice %0 {offsets = [0, 0, 0], sizes = [1, 16, 128], strides = [1, 1, 1]} : vector<2x18x128xf32> to vector<1x16x128xf32>
    %2 = vector.shape_cast %1 : vector<1x16x128xf32> to vector<16x128xf32>
    %3 = vector.extract_strided_slice %0 {offsets = [0, 1, 0], sizes = [1, 16, 128], strides = [1, 1, 1]} : vector<2x18x128xf32> to vector<1x16x128xf32>
    %4 = vector.shape_cast %3 : vector<1x16x128xf32> to vector<16x128xf32>
    %5 = vector.extract_strided_slice %0 {offsets = [0, 2, 0], sizes = [1, 16, 128], strides = [1, 1, 1]} : vector<2x18x128xf32> to vector<1x16x128xf32>
    %6 = vector.shape_cast %5 : vector<1x16x128xf32> to vector<16x128xf32>
    %7 = tpu.concatenate %2, %4, %6 in 1 : vector<16x128xf32>, vector<16x128xf32>, vector<16x128xf32> -> vector<16x384xf32>
    %8 = vector.extract_strided_slice %0 {offsets = [1, 0, 0], sizes = [1, 16, 128], strides = [1, 1, 1]} : vector<2x18x128xf32> to vector<1x16x128xf32>
    %9 = vector.shape_cast %8 : vector<1x16x128xf32> to vector<16x128xf32>
    %10 = vector.extract_strided_slice %0 {offsets = [1, 1, 0], sizes = [1, 16, 128], strides = [1, 1, 1]} : vector<2x18x128xf32> to vector<1x16x128xf32>
    %11 = vector.shape_cast %10 : vector<1x16x128xf32> to vector<16x128xf32>
    %12 = vector.extract_strided_slice %0 {offsets = [1, 2, 0], sizes = [1, 16, 128], strides = [1, 1, 1]} : vector<2x18x128xf32> to vector<1x16x128xf32>
    %13 = vector.shape_cast %12 : vector<1x16x128xf32> to vector<16x128xf32>
    %14 = tpu.concatenate %9, %11, %13 in 1 : vector<16x128xf32>, vector<16x128xf32>, vector<16x128xf32> -> vector<16x384xf32>
    %15 = tpu.concatenate %7, %14 in 0 : vector<16x384xf32>, vector<16x384xf32> -> vector<32x384xf32>
    %c0_2 = arith.constant 0 : index
    %c0_3 = arith.constant 0 : index
    %16 = vector.load %arg2[%c0_2, %c0_3] : memref<384x128xf32, #tpu.memory_space<vmem>>, vector<384x128xf32>
    %cst = arith.constant dense<0.000000e+00> : vector<32x128xf32>
    %17 = tpu.matmul %15, %16, %cst {dimension_numbers = #tpu.dot_dimension_numbers<[1], [0], [0], [1], [0, 0, 1, 1], [], []>} : vector<32x384xf32>, vector<384x128xf32>, vector<32x128xf32> -> vector<32x128xf32>
    %c0_4 = arith.constant 0 : index
    %c0_5 = arith.constant 0 : index
    %18 = vector.load %arg3[%c0_4, %c0_5] : memref<1x128xf32, #tpu.memory_space<vmem>>, vector<1x128xf32>
    %19 = vector.broadcast %18 : vector<1x128xf32> to vector<32x128xf32>
    %20 = arith.addf %17, %19 : vector<32x128xf32>
    %21 = vector.extract_strided_slice %20 {offsets = [0, 0], sizes = [16, 128], strides = [1, 1]} : vector<32x128xf32> to vector<16x128xf32>
    %c0_6 = arith.constant 0 : index
    %c0_7 = arith.constant 0 : index
    %c0_8 = arith.constant 0 : index
    %22 = vector.load %arg4[%c0_6, %c0_7, %c0_8] : memref<2x16x128xf32, #tpu.memory_space<vmem>>, vector<1x16x128xf32>
    %23 = vector.shape_cast %22 : vector<1x16x128xf32> to vector<16x128xf32>
    %24 = vector.shape_cast %21 : vector<16x128xf32> to vector<1x16x128xf32>
    tpu.vector_store %arg4[%c0_6, %c0_7, %c0_8], %24 {strides = array<i32>} : memref<2x16x128xf32, #tpu.memory_space<vmem>>, vector<1x16x128xf32>,
    %25 = vector.extract_strided_slice %20 {offsets = [16, 0], sizes = [16, 128], strides = [1, 1]} : vector<32x128xf32> to vector<16x128xf32>
    %c1 = arith.constant 1 : index
    %c0_9 = arith.constant 0 : index
    %c0_10 = arith.constant 0 : index
    %26 = vector.load %arg4[%c1, %c0_9, %c0_10] : memref<2x16x128xf32, #tpu.memory_space<vmem>>, vector<1x16x128xf32>
    %27 = vector.shape_cast %26 : vector<1x16x128xf32> to vector<16x128xf32>
    %28 = vector.shape_cast %25 : vector<16x128xf32> to vector<1x16x128xf32>
    tpu.vector_store %arg4[%c1, %c0_9, %c0_10], %28 {strides = array<i32>} : memref<2x16x128xf32, #tpu.memory_space<vmem>>, vector<1x16x128xf32>,
    return
  }
  func.func @transform_0(%arg0: i32) -> (i32, i32, i32) {
    %c0_i32 = arith.constant 0 : i32
    %c0_i32_0 = arith.constant 0 : i32
    %c0_i32_1 = arith.constant 0 : i32
    return %arg0, %c0_i32, %c0_i32_0 : i32, i32, i32
  }
  func.func @transform_1(%arg0: i32) -> (i32, i32) {
    %c0_i32 = arith.constant 0 : i32
    %c0_i32_0 = arith.constant 0 : i32
    %c0_i32_1 = arith.constant 0 : i32
    return %c0_i32, %c0_i32_0 : i32, i32
  }
  func.func @transform_2(%arg0: i32) -> (i32, i32) {
    %c0_i32 = arith.constant 0 : i32
    %c0_i32_0 = arith.constant 0 : i32
    %c0_i32_1 = arith.constant 0 : i32
    return %c0_i32, %c0_i32_0 : i32, i32
  }
  func.func @transform_3(%arg0: i32) -> (i32, i32, i32) {
    %c0_i32 = arith.constant 0 : i32
    %c0_i32_0 = arith.constant 0 : i32
    %c0_i32_1 = arith.constant 0 : i32
    return %arg0, %c0_i32, %c0_i32_0 : i32, i32, i32
  }
}

</mosaic_0001>

<llo_original>
// kernel: tpu_custom_call.1
$region0: #{tpu_custom_call.1}
  #allocation0 [shape = 'u32[]', space=smem, size = 0x4, offset = 0x4, fixed_abs, tag = 'smem constant byte address 0x4 - core index']
  #allocation1 [shape = 'u32[144,128]{1,0:T(1,128)}', space=vmem, size = 0x12000, scoped, tag = 'internal scratch']
  %s0 = inlined_call_operand.vmem [shape: f32[2,18,128], index: 0, kind: input, shape index: {}]
  %s1 = inlined_call_operand.hbm [shape: f32[384,128], index: 1, kind: input, shape index: {}]
  %s2 = inlined_call_operand.vmem [shape: f32[1,128], index: 2, kind: input, shape index: {}]
  %s3 = inlined_call_operand.hbm [shape: f32[2,16,128], index: 3, kind: output, shape index: {}]
  %s4 = sld [smem:[#allocation0]]
  $region26: #{tpu_custom_call.1} parent=0
    _
  %s6 = ssub.s32 1, %s4
  %s7 = scalar_select 0, %s6, %s4
  $region1: #{tpu_custom_call.1} parent=0
    #allocation2 [shape = 'u8[196608]{0}', space=vmem, size = 0x30000, scoped, tag = 'input window, operand 1, single buffered']
    #allocation3 [shape = 's32[1]{0}', space=sflag, size = 0x4, scoped, tag = 'scoped memory for tpu_custom_call.1']
    #allocation4 [shape = 's32[1]{0}', space=sflag, size = 0x4, scoped, tag = 'scoped memory for tpu_custom_call.1']
    #allocation5 [shape = 'u8[16384]{0}', space=vmem, size = 0x4000, scoped, tag = 'output window, operand 0, single buffered']
    %8 = vsyncpa [#allocation3], 0
    %9 = vsyncpa [#allocation4], 0
    // Predicated region
    $region2: #{tpu_custom_call.1} parent=1 // pred_check
      _
    $region3: #{tpu_custom_call.1} parent=1 // pred_check_branch
      %11 = sbr.rel (0) target = $region5
    $region4: #{tpu_custom_call.1} parent=1 // pred_region
      _
    $region5: #{tpu_custom_call.1} parent=1 // pred_fallthru
      _
    // Predicated region
    $region6: #{tpu_custom_call.1} parent=1 // pred_check
      _
    $region7: #{tpu_custom_call.1} parent=1 // pred_check_branch
      %13 = sbr.rel (0) target = $region9
    $region8: #{tpu_custom_call.1} parent=1 // pred_region
      %s15 = ssub.s32 6144, 6144
      %16 = vsyncadd [#allocation3], %s15
      %s17 = sshll.u32 [#allocation2], 4
      %s18 = int_to_ptr.vmem [resolvable:$true] %s17
      %23 = dma.hbm_to_vmem [thread:$0]  %s1, 6144, %s18, [#allocation3], 128, 128, 8
    $region9: #{tpu_custom_call.1} parent=1 // pred_fallthru
      _
    // Predicated region
    $region10: #{tpu_custom_call.1} parent=1 // pred_check
      _
    $region11: #{tpu_custom_call.1} parent=1 // pred_check_branch
      %25 = sbr.rel (0) target = $region13
    $region12: #{tpu_custom_call.1} parent=1 // pred_region
      _
    $region13: #{tpu_custom_call.1} parent=1 // pred_fallthru
      _
    // Predicated region
    $region14: #{tpu_custom_call.1} parent=1 // pred_check
      _
    $region15: #{tpu_custom_call.1} parent=1 // pred_check_branch
      %27 = sbr.rel (0) target = $region17
    $region16: #{tpu_custom_call.1} parent=1 // pred_region
      %28 = dma.done [#allocation3], 6144
    $region17: #{tpu_custom_call.1} parent=1 // pred_fallthru
      _
    %v29 = vld [vmem:[%s0] sm:$0xff]
    %v30 = vld [vmem:[%s0 + $0x8] sm:$0xff]
    %v31 = vld [vmem:[%s0 + $0x10] sm:$0x3]
    %v32 = vld [vmem:[%s0 + $0x18] sm:$0xff]
    %v33 = vld [vmem:[%s0 + $0x20] sm:$0xff]
    %v34 = vld [vmem:[%s0 + $0x28] sm:$0x3]
    %vm38 = vcmask 1046528
    %v39 = vrot.slane %v29, 1
    %v40 = vrot.slane %v30, 1
    %v41 = vsel %vm38, %v39, %v40
    %v42 = vrot.slane %v31, 1
    %v43 = vsel %vm38, %v40, %v42
    %vm46 = vcmask 1045504
    %v47 = vrot.slane %v29, 2
    %v48 = vrot.slane %v30, 2
    %v49 = vsel %vm46, %v47, %v48
    %v50 = vrot.slane %v31, 2
    %v51 = vsel %vm46, %v48, %v50
    %v57 = vrot.slane %v32, 1
    %v58 = vrot.slane %v33, 1
    %v59 = vsel %vm38, %v57, %v58
    %v60 = vrot.slane %v34, 1
    %v61 = vsel %vm38, %v58, %v60
    %v64 = vrot.slane %v32, 2
    %v65 = vrot.slane %v33, 2
    %v66 = vsel %vm46, %v64, %v65
    %v67 = vrot.slane %v34, 2
    %v68 = vsel %vm46, %v65, %v67
    %v71 = vld [vmem:[#allocation2] sm:$0xff]
    %v72 = vld [vmem:[#allocation2 + $0x8] sm:$0xff]
    %v73 = vld [vmem:[#allocation2 + $0x10] sm:$0xff]
    %v74 = vld [vmem:[#allocation2 + $0x18] sm:$0xff]
    %v75 = vld [vmem:[#allocation2 + $0x20] sm:$0xff]
    %v76 = vld [vmem:[#allocation2 + $0x28] sm:$0xff]
    %v77 = vld [vmem:[#allocation2 + $0x30] sm:$0xff]
    %v78 = vld [vmem:[#allocation2 + $0x38] sm:$0xff]
    %v79 = vld [vmem:[#allocation2 + $0x40] sm:$0xff]
    %v80 = vld [vmem:[#allocation2 + $0x48] sm:$0xff]
    %v81 = vld [vmem:[#allocation2 + $0x50] sm:$0xff]
    %v82 = vld [vmem:[#allocation2 + $0x58] sm:$0xff]
    %v83 = vld [vmem:[#allocation2 + $0x60] sm:$0xff]
    %v84 = vld [vmem:[#allocation2 + $0x68] sm:$0xff]
    %v85 = vld [vmem:[#allocation2 + $0x70] sm:$0xff]
    %v86 = vld [vmem:[#allocation2 + $0x78] sm:$0xff]
    %v87 = vld [vmem:[#allocation2 + $0x80] sm:$0xff]
    %v88 = vld [vmem:[#allocation2 + $0x88] sm:$0xff]
    %v89 = vld [vmem:[#allocation2 + $0x90] sm:$0xff]
    %v90 = vld [vmem:[#allocation2 + $0x98] sm:$0xff]
    %v91 = vld [vmem:[#allocation2 + $0xa0] sm:$0xff]
    %v92 = vld [vmem:[#allocation2 + $0xa8] sm:$0xff]
    %v93 = vld [vmem:[#allocation2 + $0xb0] sm:$0xff]
    %v94 = vld [vmem:[#allocation2 + $0xb8] sm:$0xff]
    %v95 = vld [vmem:[#allocation2 + $0xc0] sm:$0xff]
    %v96 = vld [vmem:[#allocation2 + $0xc8] sm:$0xff]
    %v97 = vld [vmem:[#allocation2 + $0xd0] sm:$0xff]
    %v98 = vld [vmem:[#allocation2 + $0xd8] sm:$0xff]
    %v99 = vld [vmem:[#allocation2 + $0xe0] sm:$0xff]
    %v100 = vld [vmem:[#allocation2 + $0xe8] sm:$0xff]
    %v101 = vld [vmem:[#allocation2 + $0xf0] sm:$0xff]
    %v102 = vld [vmem:[#allocation2 + $0xf8] sm:$0xff]
    %v103 = vld [vmem:[#allocation2 + $0x100] sm:$0xff]
    %v104 = vld [vmem:[#allocation2 + $0x108] sm:$0xff]
    %v105 = vld [vmem:[#allocation2 + $0x110] sm:$0xff]
    %v106 = vld [vmem:[#allocation2 + $0x118] sm:$0xff]
    %v107 = vld [vmem:[#allocation2 + $0x120] sm:$0xff]
    %v108 = vld [vmem:[#allocation2 + $0x128] sm:$0xff]
    %v109 = vld [vmem:[#allocation2 + $0x130] sm:$0xff]
    %v110 = vld [vmem:[#allocation2 + $0x138] sm:$0xff]
    %v111 = vld [vmem:[#allocation2 + $0x140] sm:$0xff]
    %v112 = vld [vmem:[#allocation2 + $0x148] sm:$0xff]
    %v113 = vld [vmem:[#allocation2 + $0x150] sm:$0xff]
    %v114 = vld [vmem:[#allocation2 + $0x158] sm:$0xff]
    %v115 = vld [vmem:[#allocation2 + $0x160] sm:$0xff]
    %v116 = vld [vmem:[#allocation2 + $0x168] sm:$0xff]
    %v117 = vld [vmem:[#allocation2 + $0x170] sm:$0xff]
    %v118 = vld [vmem:[#allocation2 + $0x178] sm:$0xff]
    %v119 = vld [vmem:[%s2] sm:$0x1]
    %v121 = vlaneseq
    %v122 = vshrl.u32 %v121, 7
    %v123 = vsub.s32 0, %v122
    %v124 = vrot.slane %v119, %v123
    %126 = vmatprep.subr.mxu0 0.0
    %127 = vmatpush1.msra.mxu0 %v86
    %128 = vmatprep.subr.mxu0 0.0
    %129 = vmatpush1.msra.mxu0 %v85
    %130 = vmatprep.subr.mxu0 0.0
    %131 = vmatpush1.msra.mxu0 %v84
    %132 = vmatprep.subr.mxu0 0.0
    %133 = vmatpush1.msra.mxu0 %v83
    %134 = vmatprep.subr.mxu0 0.0
    %135 = vmatpush1.msra.mxu0 %v82
    %136 = vmatprep.subr.mxu0 0.0
    %137 = vmatpush1.msra.mxu0 %v81
    %138 = vmatprep.subr.mxu0 0.0
    %139 = vmatpush1.msra.mxu0 %v80
    %140 = vmatprep.subr.mxu0 0.0
    %141 = vmatpush1.msra.mxu0 %v79
    %142 = vmatprep.subr.mxu0 0.0
    %143 = vmatpush1.msra.mxu0 %v78
    %144 = vmatprep.subr.mxu0 0.0
    %145 = vmatpush1.msra.mxu0 %v77
    %146 = vmatprep.subr.mxu0 0.0
    %147 = vmatpush1.msra.mxu0 %v76
    %148 = vmatprep.subr.mxu0 0.0
    %149 = vmatpush1.msra.mxu0 %v75
    %150 = vmatprep.subr.mxu0 0.0
    %151 = vmatpush1.msra.mxu0 %v74
    %152 = vmatprep.subr.mxu0 0.0
    %153 = vmatpush1.msra.mxu0 %v73
    %154 = vmatprep.subr.mxu0 0.0
    %155 = vmatpush1.msra.mxu0 %v72
    %156 = vmatprep.subr.mxu0 0.0
    %157 = vmatpush1.msra.mxu0 %v71
    %158 = vmatprep.subr.mxu0 0.0
    %159 = vmatpush2.msra.mxu0 %v102
    %160 = vmatprep.subr.mxu0 0.0
    %161 = vmatpush2.msra.mxu0 %v101
    %162 = vmatprep.subr.mxu0 0.0
    %163 = vmatpush2.msra.mxu0 %v100
    %164 = vmatprep.subr.mxu0 0.0
    %165 = vmatpush2.msra.mxu0 %v99
    %166 = vmatprep.subr.mxu0 0.0
    %167 = vmatpush2.msra.mxu0 %v98
    %168 = vmatprep.subr.mxu0 0.0
    %169 = vmatpush2.msra.mxu0 %v97
    %170 = vmatprep.subr.mxu0 0.0
    %171 = vmatpush2.msra.mxu0 %v96
    %172 = vmatprep.subr.mxu0 0.0
    %173 = vmatpush2.msra.mxu0 %v95
    %174 = vmatprep.subr.mxu0 0.0
    %175 = vmatpush2.msra.mxu0 %v94
    %176 = vmatprep.subr.mxu0 0.0
    %177 = vmatpush2.msra.mxu0 %v93
    %178 = vmatprep.subr.mxu0 0.0
    %179 = vmatpush2.msra.mxu0 %v92
    %180 = vmatprep.subr.mxu0 0.0
    %181 = vmatpush2.msra.mxu0 %v91
    %182 = vmatprep.subr.mxu0 0.0
    %183 = vmatpush2.msra.mxu0 %v90
    %184 = vmatprep.subr.mxu0 0.0
    %185 = vmatpush2.msra.mxu0 %v89
    %186 = vmatprep.subr.mxu0 0.0
    %187 = vmatpush2.msra.mxu0 %v88
    %188 = vmatprep.subr.mxu0 0.0
    %189 = vmatpush2.msra.mxu0 %v87
    %190 = vmatprep.mubr.f32.mxu0 %v41
    %191 = vmatmul.mubr.f32.gmra.mxu0 %v29
    %v192 = vpop.f32.mrf.mxu0
    %v193 = vadd.f32 %v124, %v192
    %v194 = vpop.f32.mrf.mxu0
    %195 = vmatprep.mubr.f32.mxu0 %v43
    %196 = vmatmul.mubr.f32.gmra.mxu0 %v30
    %v197 = vpop.f32.mrf.mxu0
    %v198 = vadd.f32 %v124, %v197
    %v199 = vpop.f32.mrf.mxu0
    %200 = vmatprep.mubr.f32.mxu0 %v59
    %201 = vmatmul.mubr.f32.gmra.mxu0 %v32
    %v202 = vpop.f32.mrf.mxu0
    %v203 = vadd.f32 %v124, %v202
    %v204 = vpop.f32.mrf.mxu0
    %205 = vmatprep.mubr.f32.mxu0 %v61
    %206 = vmatmul.mubr.f32.gmra.mxu0 %v33
    %v207 = vpop.f32.mrf.mxu0
    %v208 = vadd.f32 %v124, %v207
    %v209 = vpop.f32.mrf.mxu0
    %210 = vdwg.mxu0
    %211 = vmatprep.subr.mxu0 0.0
    %212 = vmatpush1.msra.mxu0 %v118
    %213 = vmatprep.subr.mxu0 0.0
    %214 = vmatpush1.msra.mxu0 %v117
    %215 = vmatprep.subr.mxu0 0.0
    %216 = vmatpush1.msra.mxu0 %v116
    %217 = vmatprep.subr.mxu0 0.0
    %218 = vmatpush1.msra.mxu0 %v115
    %219 = vmatprep.subr.mxu0 0.0
    %220 = vmatpush1.msra.mxu0 %v114
    %221 = vmatprep.subr.mxu0 0.0
    %222 = vmatpush1.msra.mxu0 %v113
    %223 = vmatprep.subr.mxu0 0.0
    %224 = vmatpush1.msra.mxu0 %v112
    %225 = vmatprep.subr.mxu0 0.0
    %226 = vmatpush1.msra.mxu0 %v111
    %227 = vmatprep.subr.mxu0 0.0
    %228 = vmatpush1.msra.mxu0 %v110
    %229 = vmatprep.subr.mxu0 0.0
    %230 = vmatpush1.msra.mxu0 %v109
    %231 = vmatprep.subr.mxu0 0.0
    %232 = vmatpush1.msra.mxu0 %v108
    %233 = vmatprep.subr.mxu0 0.0
    %234 = vmatpush1.msra.mxu0 %v107
    %235 = vmatprep.subr.mxu0 0.0
    %236 = vmatpush1.msra.mxu0 %v106
    %237 = vmatprep.subr.mxu0 0.0
    %238 = vmatpush1.msra.mxu0 %v105
    %239 = vmatprep.subr.mxu0 0.0
    %240 = vmatpush1.msra.mxu0 %v104
    %241 = vmatprep.subr.mxu0 0.0
    %242 = vmatpush1.msra.mxu0 %v103
    %243 = vmatprep.subr.mxu0 0.0
    %244 = vmatpush2.msra.mxu0 0.0
    %245 = vmatprep.subr.mxu0 0.0
    %246 = vmatpush2.msra.mxu0 0.0
    %247 = vmatprep.subr.mxu0 0.0
    %248 = vmatpush2.msra.mxu0 0.0
    %249 = vmatprep.subr.mxu0 0.0
    %250 = vmatpush2.msra.mxu0 0.0
    %251 = vmatprep.subr.mxu0 0.0
    %252 = vmatpush2.msra.mxu0 0.0
    %253 = vmatprep.subr.mxu0 0.0
    %254 = vmatpush2.msra.mxu0 0.0
    %255 = vmatprep.subr.mxu0 0.0
    %256 = vmatpush2.msra.mxu0 0.0
    %257 = vmatprep.subr.mxu0 0.0
    %258 = vmatpush2.msra.mxu0 0.0
    %259 = vmatprep.subr.mxu0 0.0
    %260 = vmatpush2.msra.mxu0 0.0
    %261 = vmatprep.subr.mxu0 0.0
    %262 = vmatpush2.msra.mxu0 0.0
    %263 = vmatprep.subr.mxu0 0.0
    %264 = vmatpush2.msra.mxu0 0.0
    %265 = vmatprep.subr.mxu0 0.0
    %266 = vmatpush2.msra.mxu0 0.0
    %267 = vmatprep.subr.mxu0 0.0
    %268 = vmatpush2.msra.mxu0 0.0
    %269 = vmatprep.subr.mxu0 0.0
    %270 = vmatpush2.msra.mxu0 0.0
    %271 = vmatprep.subr.mxu0 0.0
    %272 = vmatpush2.msra.mxu0 0.0
    %273 = vmatprep.subr.mxu0 0.0
    %274 = vmatpush2.msra.mxu0 0.0
    %275 = vmatprep.mubr.f32.mxu0 0.0
    %276 = vmatmul.mubr.f32.gmra.mxu0 %v49
    %v277 = vpop.f32.mrf.mxu0
    %v278 = vadd.f32 %v193, %v277
    %v279 = vpop.f32.mrf.mxu0
    %280 = vmatprep.mubr.f32.mxu0 0.0
    %281 = vmatmul.mubr.f32.gmra.mxu0 %v51
    %v282 = vpop.f32.mrf.mxu0
    %v283 = vadd.f32 %v198, %v282
    %v284 = vpop.f32.mrf.mxu0
    %285 = vmatprep.mubr.f32.mxu0 0.0
    %286 = vmatmul.mubr.f32.gmra.mxu0 %v66
    %v287 = vpop.f32.mrf.mxu0
    %v288 = vadd.f32 %v203, %v287
    %v289 = vpop.f32.mrf.mxu0
    %290 = vmatprep.mubr.f32.mxu0 0.0
    %291 = vmatmul.mubr.f32.gmra.mxu0 %v68
    %v292 = vpop.f32.mrf.mxu0
    %v293 = vadd.f32 %v208, %v292
    %v294 = vpop.f32.mrf.mxu0
    %295 = vdwg.mxu0
    %296 = vst [vmem:[#allocation5] sm:$0xff] %v278
    %297 = vst [vmem:[#allocation5 + $0x8] sm:$0xff] %v283
    %s298 = scalar_lea.vmem [#allocation5], 16
    %299 = vst [vmem:[%s298] sm:$0xff] %v288
    %300 = vst [vmem:[%s298 + $0x8] sm:$0xff] %v293
    // Predicated region
    $region18: #{tpu_custom_call.1} parent=1 // pred_check
      _
    $region19: #{tpu_custom_call.1} parent=1 // pred_check_branch
      %302 = sbr.rel (0) target = $region21
    $region20: #{tpu_custom_call.1} parent=1 // pred_region
      %s304 = ssub.s32 512, 512
      %305 = vsyncadd [#allocation4], %s304
      %s306 = sshll.u32 [#allocation5], 4
      %s307 = int_to_ptr.vmem [resolvable:$true] %s306
      %312 = dma.vmem_to_hbm [thread:$0]  %s307, 512, %s3, [#allocation4], 128, 128, 8
    $region21: #{tpu_custom_call.1} parent=1 // pred_fallthru
      _
    // Predicated region
    $region22: #{tpu_custom_call.1} parent=1 // pred_check
      _
    $region23: #{tpu_custom_call.1} parent=1 // pred_check_branch
      %314 = sbr.rel (0) target = $region25
    $region24: #{tpu_custom_call.1} parent=1 // pred_region
      %315 = dma.done [#allocation4], 512
    $region25: #{tpu_custom_call.1} parent=1 // pred_fallthru
      _
    %316 = vsyncpa [#allocation3], 1
    %317 = vsyncpa [#allocation4], 1

</llo_original>
